<compile_context>
chip_gen: v7x
topology: tpu7x:2x2x1
jax: 0.10.0
libtpu: 0.0.40
codegen_flags: <defaults>
</compile_context>

<pallas_src>
import functools

import jax
import jax.numpy as jnp
import numpy as np
from jax.experimental import pallas as pl
from jax.experimental.pallas import tpu as pltpu


# ---------------------------------------------------------------------------
# Generation-aware VMEM budgets (v5e/v6e: 128 MiB, v7x: 64 MiB per TC).
# ---------------------------------------------------------------------------
@functools.lru_cache(maxsize=None)
def _hw_vmem_bytes():
    try:
        info = pltpu.get_tpu_info()
        v = int(getattr(info, "vmem_capacity_bytes", 0) or 0)
        if v > 0:
            return v
    except Exception:
        pass
    return 64 * 1024 * 1024  # conservative fallback (v7x per-TC VMEM)


def _vmem_limit_bytes():
    # ~60% of physical VMEM: leaves headroom for Mosaic internal scratch.
    return min(int(_hw_vmem_bytes() * 0.6), 100 * 1024 * 1024)


def _tile_cap_bytes():
    # Per-step working-set cap: ~8 MiB on v7x (64 MiB), ~16 MiB on v5e/v6e.
    return _hw_vmem_bytes() // 8


# ---------------------------------------------------------------------------
# Tile-size helpers
# ---------------------------------------------------------------------------
def _pick_batch_block(B, per_batch_bytes, fixed_bytes, cap_bytes):
    """Largest divisor of B under the VMEM cap, capped at B//2 so the
    'parallel' grid axis has >= 2 steps when B >= 2 (v7x has 2 TCs)."""
    limit = max(1, B // 2) if B >= 2 else 1
    best = 1
    for d in range(1, limit + 1):
        if B % d == 0 and fixed_bytes + d * per_batch_bytes <= cap_bytes:
            best = d
    return best


def _pick_pairwise_tiles(H, cap_bytes):
    """Row (i) and column (j) tiles for the pairwise kernel.
    ti is a multiple of 8 dividing H (or H itself); tj is a multiple of 128
    dividing H (or H itself), so every block obeys the (8,128) layout rule.
    Footprint accounts for the (ti,tj,H) relu temp + double-buffered blocks.
    Prefers full-width c (tj = H) and shrinks ti first; only tiles j when
    even ti = 8 does not fit (large H on v7x)."""
    def divisors(step):
        return sorted([d for d in range(step, H, step) if H % d == 0],
                      reverse=True)

    ti_cands = [H] + divisors(8)
    tj_cands = [H] + divisors(128)

    def footprint(ti, tj):
        hid = ti * tj * H * 4                                  # relu/dot temp
        blocks = 2 * 4 * (ti * H + tj * H + 2 * ti * tj)       # 2x-buffered a,c,gate,out
        return hid + blocks

    for tj in tj_cands:
        for ti in ti_cands:
            if footprint(ti, tj) <= cap_bytes:
                return ti, tj
    return ti_cands[-1], tj_cands[-1]   # smallest legal tiles (budget guard)


def _pick_flat_tile(M, rows, cap_bytes):
    """Lane-dense tile of the flattened (rows, M) reduction input: a multiple
    of 128 dividing M (or M itself) whose block footprint fits the cap."""
    cands = [M] + sorted([d for d in range(128, M, 128) if M % d == 0],
                         reverse=True)
    for tm in cands:
        if 3 * rows * tm * 4 <= cap_bytes:   # block (x2 buffers) + temps
            return tm
    return cands[-1]


# ---------------------------------------------------------------------------
# Kernel 1: structure-learning projections (wf2/bf2 pre-folded in wrapper)
#   a_s[b] = relu(img[b] @ wf1 + bf1) @ (wf2 @ ws1a) + bf2 @ ws1a
#   c_s[b] = relu(txt[b] @ wf1 + bf1) @ (wf2 @ ws1b) + bf2 @ ws1b + bs1
# Batch is folded into the M dimension of every matmul; no in-kernel concat.
# ---------------------------------------------------------------------------
def _structure_proj_kernel(img_ref, txt_ref, wf1_ref, bf1_ref,
                           wa_ref, ba_ref, wc_ref, bc_ref, a_ref, c_ref):
    Bb, H, F = img_ref.shape
    img = img_ref[...].reshape(Bb * H, F)
    txt = txt_ref[...].reshape(Bb * H, F)
    h_img = jnp.maximum(
        jnp.dot(img, wf1_ref[...], preferred_element_type=jnp.float32)
        + bf1_ref[...], 0.0)
    h_txt = jnp.maximum(
        jnp.dot(txt, wf1_ref[...], preferred_element_type=jnp.float32)
        + bf1_ref[...], 0.0)
    a_ref[...] = (jnp.dot(h_img, wa_ref[...],
                          preferred_element_type=jnp.float32)
                  + ba_ref[...]).reshape(Bb, H, H)
    c_ref[...] = (jnp.dot(h_txt, wc_ref[...],
                          preferred_element_type=jnp.float32)
                  + bc_ref[...]).reshape(Bb, H, H)


# ---------------------------------------------------------------------------
# Kernel 2: causal-net projections — single MXU pass against wc1a||wc1b
# ---------------------------------------------------------------------------
def _causal_proj_kernel(s_ref, wcat_ref, bc1_ref, a_ref, c_ref):
    Bb, H, _ = s_ref.shape
    s = s_ref[...].reshape(Bb * H, H)
    y = jnp.dot(s, wcat_ref[...], preferred_element_type=jnp.float32)  # (Bb*H, 2H)
    a_ref[...] = y[:, :H].reshape(Bb, H, H)
    c_ref[...] = (y[:, H:] + bc1_ref[...]).reshape(Bb, H, H)


# ---------------------------------------------------------------------------
# Kernel 3: pairwise score, tiled over (i, j)
#   out[i, j] = sigmoid( sum_h relu(a[i, h] + c[j, h]) * w2[h] + b2 )
# The Linear(H,1) contraction runs on the MXU; scalar bias b2 lives in SMEM.
# ---------------------------------------------------------------------------
def _pairwise_score_block(a, c, w2, b2):
    ti, H = a.shape
    tj = c.shape[0]
    hid = jnp.maximum(a[:, None, :] + c[None, :, :], 0.0)        # (TI, TJ, H)
    logits = jnp.dot(hid.reshape(ti * tj, H), w2,                # MXU, N=1
                     preferred_element_type=jnp.float32).reshape(ti, tj) + b2
    return jax.nn.sigmoid(logits)


def _pairwise_kernel(a_ref, c_ref, w2_ref, b2_ref, out_ref):
    out_ref[0] = _pairwise_score_block(a_ref[0], c_ref[0], w2_ref[...],
                                       b2_ref[0, 0])


def _pairwise_gated_kernel(gate_ref, a_ref, c_ref, w2_ref, b2_ref, out_ref):
    score = _pairwise_score_block(a_ref[0], c_ref[0], w2_ref[...],
                                  b2_ref[0, 0])
    # Exact parity with torch: edges exist only where structure != 0.
    out_ref[0] = jnp.where(gate_ref[0] != 0.0, score, 0.0)


# ---------------------------------------------------------------------------
# Kernel 4: invariance partial sums over a lane-dense (B, H*H) view
# (no rolled copy is materialized; accumulation across an "arbitrary" axis)
# ---------------------------------------------------------------------------
def _invariance_partial_kernel(cm_ref, abs_ref, std_ref):
    @pl.when(pl.program_id(0) == 0)
    def _():
        abs_ref[...] = jnp.zeros_like(abs_ref)
        std_ref[...] = jnp.zeros_like(std_ref)

    cm = cm_ref[...]                         # (B, TM), lane-dense
    B = cm.shape[0]
    # sum_b |cm[b] - cm[b-1]| with wraparound == |cm - roll(cm, 1, axis=0)|
    wrap = jnp.sum(jnp.abs(cm[0:1, :] - cm[B - 1:B, :]))
    seq = jnp.sum(jnp.abs(cm[1:, :] - cm[:-1, :]))
    abs_ref[...] += jnp.reshape(wrap + seq, (1, 1))

    mean_b = jnp.mean(cm, axis=0, keepdims=True)
    var = jnp.sum((cm - mean_b) ** 2, axis=0, keepdims=True) / (B - 1)  # ddof=1
    std_ref[...] += jnp.reshape(jnp.sum(jnp.sqrt(var)), (1, 1))


# ---------------------------------------------------------------------------
# pallas_call wrappers
# ---------------------------------------------------------------------------
def _structure_projections(img, txt, wf1, bf1, wa, ba, wc, bc):
    B, H, F = img.shape
    per_b = 4 * H * (6 * F + 8 * H)              # blocks (2x buffered) + temps
    fixed = 8 * (F * H + 2 * H * H + 4 * H)      # resident weights / biases
    bb = _pick_batch_block(B, per_b, fixed, _tile_cap_bytes())

    def full(shape):
        n = len(shape)
        return pl.BlockSpec(shape, lambda b: (0,) * n)

    return pl.pallas_call(
        _structure_proj_kernel,
        out_shape=(jax.ShapeDtypeStruct((B, H, H), jnp.float32),
                   jax.ShapeDtypeStruct((B, H, H), jnp.float32)),
        grid=(B // bb,),
        in_specs=[
            pl.BlockSpec((bb, H, F), lambda b: (b, 0, 0)),
            pl.BlockSpec((bb, H, F), lambda b: (b, 0, 0)),
            full((F, H)), full((1, H)),
            full((H, H)), full((1, H)),
            full((H, H)), full((1, H)),
        ],
        out_specs=(pl.BlockSpec((bb, H, H), lambda b: (b, 0, 0)),
                   pl.BlockSpec((bb, H, H), lambda b: (b, 0, 0))),
        compiler_params=pltpu.CompilerParams(
            dimension_semantics=("parallel",),
            vmem_limit_bytes=_vmem_limit_bytes()),
    )(img, txt, wf1, bf1, wa, ba, wc, bc)


def _causal_projections(structure, w_cat, bc1):
    B, H, _ = structure.shape
    per_b = 4 * H * (10 * H)
    fixed = 8 * (2 * H * H + H)
    bb = _pick_batch_block(B, per_b, fixed, _tile_cap_bytes())

    def full(shape):
        n = len(shape)
        return pl.BlockSpec(shape, lambda b: (0,) * n)

    return pl.pallas_call(
        _causal_proj_kernel,
        out_shape=(jax.ShapeDtypeStruct((B, H, H), jnp.float32),
                   jax.ShapeDtypeStruct((B, H, H), jnp.float32)),
        grid=(B // bb,),
        in_specs=[
            pl.BlockSpec((bb, H, H), lambda b: (b, 0, 0)),
            full((H, 2 * H)), full((1, H)),
        ],
        out_specs=(pl.BlockSpec((bb, H, H), lambda b: (b, 0, 0)),
                   pl.BlockSpec((bb, H, H), lambda b: (b, 0, 0))),
        compiler_params=pltpu.CompilerParams(
            dimension_semantics=("parallel",),
            vmem_limit_bytes=_vmem_limit_bytes()),
    )(structure, w_cat, bc1)


def _pairwise_scores(a, c, w2, b2, gate=None):
    B, H, _ = a.shape
    ti, tj = _pick_pairwise_tiles(H, _tile_cap_bytes())
    grid = (B, H // ti, H // tj)

    a_spec = pl.BlockSpec((1, ti, H), lambda b, i, j: (b, i, 0))
    c_spec = pl.BlockSpec((1, tj, H), lambda b, i, j: (b, j, 0))
    w_spec = pl.BlockSpec((H, 1), lambda b, i, j: (0, 0))
    b_spec = pl.BlockSpec(memory_space=pltpu.MemorySpace.SMEM)   # scalar bias
    o_spec = pl.BlockSpec((1, ti, tj), lambda b, i, j: (b, i, j))

    if gate is None:
        kernel = _pairwise_kernel
        in_specs = [a_spec, c_spec, w_spec, b_spec]
        args = (a, c, w2, b2)
    else:
        g_spec = pl.BlockSpec((1, ti, tj), lambda b, i, j: (b, i, j))
        kernel = _pairwise_gated_kernel
        in_specs = [g_spec, a_spec, c_spec, w_spec, b_spec]
        args = (gate, a, c, w2, b2)

    return pl.pallas_call(
        kernel,
        out_shape=jax.ShapeDtypeStruct((B, H, H), jnp.float32),
        grid=grid,
        in_specs=in_specs,
        out_specs=o_spec,
        compiler_params=pltpu.CompilerParams(
            dimension_semantics=("parallel", "parallel", "parallel"),
            vmem_limit_bytes=_vmem_limit_bytes()),
    )(*args)


def _invariance_score(causal):
    B, H, _ = causal.shape
    assert B >= 2, "invariance score requires batch >= 2 (std with ddof=1)"
    M = H * H
    causal2d = causal.reshape(B, M)        # contiguous view -> lane-dense blocks
    tm = _pick_flat_tile(M, B, _tile_cap_bytes())
    abs_sum, std_sum = pl.pallas_call(
        _invariance_partial_kernel,
        out_shape=(jax.ShapeDtypeStruct((1, 1), jnp.float32),
                   jax.ShapeDtypeStruct((1, 1), jnp.float32)),
        grid=(M // tm,),
        in_specs=[pl.BlockSpec((B, tm), lambda i: (0, i))],
        out_specs=(pl.BlockSpec((1, 1), lambda i: (0, 0)),
                   pl.BlockSpec((1, 1), lambda i: (0, 0))),
        compiler_params=pltpu.CompilerParams(
            dimension_semantics=("arbitrary",),
            vmem_limit_bytes=_vmem_limit_bytes()),
    )(causal2d)
    stability = abs_sum[0, 0] / (B * M)
    consistency = std_sum[0, 0] / M
    return 1.0 - (stability + consistency) / 2.0


def causal_graph_learning(image_features, text_features, p):
    B, H, F = image_features.shape
    assert text_features.shape == (B, H, F)

    # Algebraic fusion: no nonlinearity between ftrans layer 2 and the
    # structure projections, so fold wf2/bf2 into ws1a/ws1b once per call
    # (tiny (H,H)x(H,H) XLA matmuls; removes a full (B*H,H)x(H,H) MXU pass
    # per stream from kernel 1).
    wa = p["wf2"] @ p["ws1a"]
    wc = p["wf2"] @ p["ws1b"]
    ba = p["bf2"] @ p["ws1a"]
    bc = p["bf2"] @ p["ws1b"] + p["bs1"]

    a_s, c_s = _structure_projections(image_features, text_features,
                                      p["wf1"], p["bf1"], wa, ba, wc, bc)
    structure = _pairwise_scores(a_s, c_s, p["ws2"], p["bs2"])

    # Single MXU pass over `structure` for both causal projections.
    w_cat = jnp.concatenate([p["wc1a"], p["wc1b"]], axis=1)      # (H, 2H)
    a_c, c_c = _causal_projections(structure, w_cat, p["bc1"])

    # `structure != 0` edge gate kept for exact parity with the reference
    # (sigmoid may underflow to exactly 0 in f32).
    causal = _pairwise_scores(a_c, c_c, p["wc2"], p["bc2"], gate=structure)

    invariance = _invariance_score(causal)

    return {"structure": structure,
            "causal_matrix": causal,
            "invariance_score": invariance}


# ---------------------------------------------------------------------------
# Parameters (PyTorch-style uniform +-1/sqrt(fan_in) init, deterministic)
# ---------------------------------------------------------------------------
def init_params(key, feature_dim, hidden_dim):
    F, H = feature_dim, hidden_dim
    ks = jax.random.split(key, 16)

    def lin(kw, kb, fan_in, w_shape, b_shape):
        bound = 1.0 / np.sqrt(fan_in)
        w = jax.random.uniform(kw, w_shape, jnp.float32, -bound, bound)
        b = jax.random.uniform(kb, b_shape, jnp.float32, -bound, bound)
        return w, b

    wf1, bf1 = lin(ks[0], ks[1], F, (F, H), (1, H))
    wf2, bf2 = lin(ks[2], ks[3], H, (H, H), (1, H))
    ws1, bs1 = lin(ks[4], ks[5], 2 * H, (2 * H, H), (1, H))
    ws2, bs2 = lin(ks[6], ks[7], H, (H, 1), (1, 1))
    wc1, bc1 = lin(ks[8], ks[9], 2 * H, (2 * H, H), (1, H))
    wc2, bc2 = lin(ks[10], ks[11], H, (H, 1), (1, 1))

    return dict(
        wf1=wf1, bf1=bf1, wf2=wf2, bf2=bf2,
        ws1a=ws1[:H], ws1b=ws1[H:], bs1=bs1, ws2=ws2, bs2=bs2,
        wc1a=wc1[:H], wc1b=wc1[H:], bc1=bc1, wc2=wc2, bc2=bc2,
    )


# ---------------------------------------------------------------------------
# Pure-JAX reference (same math, unfused) for a correctness check
# ---------------------------------------------------------------------------
def _reference(img, txt, p):
    def ftrans(x):
        h = jnp.maximum(x @ p["wf1"] + p["bf1"][0], 0.0)
        return h @ p["wf2"] + p["bf2"][0]

    def pairwise(rf, cf, w1a, w1b, b1, w2, b2):
        a = rf @ w1a
        b = cf @ w1b
        hid = jnp.maximum(a[:, :, None, :] + b[:, None, :, :] + b1[0], 0.0)
        logits = jnp.einsum("bijh,h->bij", hid, w2[:, 0]) + b2[0, 0]
        return jax.nn.sigmoid(logits)

    img_h, txt_h = ftrans(img), ftrans(txt)
    structure = pairwise(img_h, txt_h, p["ws1a"], p["ws1b"], p["bs1"],
                         p["ws2"], p["bs2"])
    score = pairwise(structure, structure, p["wc1a"], p["wc1b"], p["bc1"],
                     p["wc2"], p["bc2"])
    causal = jnp.where(structure != 0.0, score, 0.0)

    rolled = jnp.roll(causal, 1, axis=0)
    stability = jnp.mean(jnp.abs(causal - rolled))
    consistency = jnp.mean(jnp.std(causal, axis=0, ddof=1))
    inv = 1.0 - (stability + consistency) / 2.0
    return structure, causal, inv


if __name__ == "__main__":
    B, F, H = 2, 16, 32   # batch, feature_dim, hidden_dim (inputs: (B, H, F))

    key = jax.random.PRNGKey(0)
    k_img, k_txt, k_par = jax.random.split(key, 3)
    image_features = jax.random.normal(k_img, (B, H, F), jnp.float32)
    text_features = jax.random.normal(k_txt, (B, H, F), jnp.float32)
    params = init_params(k_par, F, H)

    out = causal_graph_learning(image_features, text_features, params)
    jax.block_until_ready(out)

    ref_structure, ref_causal, ref_inv = _reference(image_features,
                                                    text_features, params)
    np.testing.assert_allclose(np.asarray(out["structure"]),
                               np.asarray(ref_structure),
                               rtol=5e-5, atol=2e-5)
    np.testing.assert_allclose(np.asarray(out["causal_matrix"]),
                               np.asarray(ref_causal),
                               rtol=5e-5, atol=2e-5)
    np.testing.assert_allclose(np.asarray(out["invariance_score"]),
                               np.asarray(ref_inv),
                               rtol=5e-5, atol=2e-5)

    print("KERNEL_OK")
</pallas_src>

<mosaic_0001>
module attributes {stable_mosaic.version = 11 : i64} {
  func.func @_structure_proj_kernel(%arg0: i32, %arg1: memref<1x32x16xf32, #tpu.memory_space<vmem>>, %arg2: memref<1x32x16xf32, #tpu.memory_space<vmem>>, %arg3: memref<16x32xf32, #tpu.memory_space<vmem>>, %arg4: memref<1x32xf32, #tpu.memory_space<vmem>>, %arg5: memref<32x32xf32, #tpu.memory_space<vmem>>, %arg6: memref<1x32xf32, #tpu.memory_space<vmem>>, %arg7: memref<32x32xf32, #tpu.memory_space<vmem>>, %arg8: memref<1x32xf32, #tpu.memory_space<vmem>>, %arg9: memref<1x32x32xf32, #tpu.memory_space<vmem>>, %arg10: memref<1x32x32xf32, #tpu.memory_space<vmem>>) attributes {dimension_semantics = [#tpu.dimension_semantics<parallel>], iteration_bounds = array<i64: 2>, scalar_prefetch = 0 : i64, scratch_operands = 0 : i64, tpu.core_type = #tpu.core_type<tc>, window_params = [{transform_indices = @transform_0, window_bounds = array<i64: 1, 32, 16>}, {transform_indices = @transform_1, window_bounds = array<i64: 1, 32, 16>}, {pipeline_mode = #tpu.pipeline_mode<synchronous>, transform_indices = @transform_2, window_bounds = array<i64: 16, 32>}, {pipeline_mode = #tpu.pipeline_mode<synchronous>, transform_indices = @transform_3, window_bounds = array<i64: 1, 32>}, {pipeline_mode = #tpu.pipeline_mode<synchronous>, transform_indices = @transform_4, window_bounds = array<i64: 32, 32>}, {pipeline_mode = #tpu.pipeline_mode<synchronous>, transform_indices = @transform_5, window_bounds = array<i64: 1, 32>}, {pipeline_mode = #tpu.pipeline_mode<synchronous>, transform_indices = @transform_6, window_bounds = array<i64: 32, 32>}, {pipeline_mode = #tpu.pipeline_mode<synchronous>, transform_indices = @transform_7, window_bounds = array<i64: 1, 32>}, {transform_indices = @transform_8, window_bounds = array<i64: 1, 32, 32>}, {transform_indices = @transform_9, window_bounds = array<i64: 1, 32, 32>}]} {
    %c0 = arith.constant 0 : index
    %c0_0 = arith.constant 0 : index
    %c0_1 = arith.constant 0 : index
    %0 = vector.load %arg1[%c0, %c0_0, %c0_1] : memref<1x32x16xf32, #tpu.memory_space<vmem>>, vector<1x32x16xf32>
    %1 = vector.shape_cast %0 : vector<1x32x16xf32> to vector<32x16xf32>
    %c0_2 = arith.constant 0 : index
    %c0_3 = arith.constant 0 : index
    %c0_4 = arith.constant 0 : index
    %2 = vector.load %arg2[%c0_2, %c0_3, %c0_4] : memref<1x32x16xf32, #tpu.memory_space<vmem>>, vector<1x32x16xf32>
    %3 = vector.shape_cast %2 : vector<1x32x16xf32> to vector<32x16xf32>
    %c0_5 = arith.constant 0 : index
    %c0_6 = arith.constant 0 : index
    %4 = vector.load %arg3[%c0_5, %c0_6] : memref<16x32xf32, #tpu.memory_space<vmem>>, vector<16x32xf32>
    %cst = arith.constant dense<0.000000e+00> : vector<32x32xf32>
    %5 = tpu.matmul %1, %4, %cst {dimension_numbers = #tpu.dot_dimension_numbers<[1], [0], [0], [1], [0, 0, 1, 1], [], []>} : vector<32x16xf32>, vector<16x32xf32>, vector<32x32xf32> -> vector<32x32xf32>
    %c0_7 = arith.constant 0 : index
    %c0_8 = arith.constant 0 : index
    %6 = vector.load %arg4[%c0_7, %c0_8] : memref<1x32xf32, #tpu.memory_space<vmem>>, vector<1x32xf32>
    %7 = vector.broadcast %6 : vector<1x32xf32> to vector<32x32xf32>
    %8 = arith.addf %5, %7 : vector<32x32xf32>
    %cst_9 = arith.constant 0.000000e+00 : f32
    %9 = vector.broadcast %cst_9 : f32 to vector<32x32xf32>
    %10 = arith.maximumf %8, %9 : vector<32x32xf32>
    %c0_10 = arith.constant 0 : index
    %c0_11 = arith.constant 0 : index
    %11 = vector.load %arg3[%c0_10, %c0_11] : memref<16x32xf32, #tpu.memory_space<vmem>>, vector<16x32xf32>
    %cst_12 = arith.constant dense<0.000000e+00> : vector<32x32xf32>
    %12 = tpu.matmul %3, %11, %cst_12 {dimension_numbers = #tpu.dot_dimension_numbers<[1], [0], [0], [1], [0, 0, 1, 1], [], []>} : vector<32x16xf32>, vector<16x32xf32>, vector<32x32xf32> -> vector<32x32xf32>
    %c0_13 = arith.constant 0 : index
    %c0_14 = arith.constant 0 : index
    %13 = vector.load %arg4[%c0_13, %c0_14] : memref<1x32xf32, #tpu.memory_space<vmem>>, vector<1x32xf32>
    %14 = vector.broadcast %13 : vector<1x32xf32> to vector<32x32xf32>
    %15 = arith.addf %12, %14 : vector<32x32xf32>
    %cst_15 = arith.constant 0.000000e+00 : f32
    %16 = vector.broadcast %cst_15 : f32 to vector<32x32xf32>
    %17 = arith.maximumf %15, %16 : vector<32x32xf32>
    %c0_16 = arith.constant 0 : index
    %c0_17 = arith.constant 0 : index
    %18 = vector.load %arg5[%c0_16, %c0_17] : memref<32x32xf32, #tpu.memory_space<vmem>>, vector<32x32xf32>
    %cst_18 = arith.constant dense<0.000000e+00> : vector<32x32xf32>
    %19 = tpu.matmul %10, %18, %cst_18 {dimension_numbers = #tpu.dot_dimension_numbers<[1], [0], [0], [1], [0, 0, 1, 1], [], []>} : vector<32x32xf32>, vector<32x32xf32>, vector<32x32xf32> -> vector<32x32xf32>
    %c0_19 = arith.constant 0 : index
    %c0_20 = arith.constant 0 : index
    %20 = vector.load %arg6[%c0_19, %c0_20] : memref<1x32xf32, #tpu.memory_space<vmem>>, vector<1x32xf32>
    %21 = vector.broadcast %20 : vector<1x32xf32> to vector<32x32xf32>
    %22 = arith.addf %19, %21 : vector<32x32xf32>
    %23 = vector.shape_cast %22 : vector<32x32xf32> to vector<1x32x32xf32>
    %c0_21 = arith.constant 0 : index
    %c0_22 = arith.constant 0 : index
    %c0_23 = arith.constant 0 : index
    %24 = vector.load %arg9[%c0_21, %c0_22, %c0_23] : memref<1x32x32xf32, #tpu.memory_space<vmem>>, vector<1x32x32xf32>
    tpu.vector_store %arg9[%c0_21, %c0_22, %c0_23], %23 {strides = array<i32>} : memref<1x32x32xf32, #tpu.memory_space<vmem>>, vector<1x32x32xf32>,
    %c0_24 = arith.constant 0 : index
    %c0_25 = arith.constant 0 : index
    %25 = vector.load %arg7[%c0_24, %c0_25] : memref<32x32xf32, #tpu.memory_space<vmem>>, vector<32x32xf32>
    %cst_26 = arith.constant dense<0.000000e+00> : vector<32x32xf32>
    %26 = tpu.matmul %17, %25, %cst_26 {dimension_numbers = #tpu.dot_dimension_numbers<[1], [0], [0], [1], [0, 0, 1, 1], [], []>} : vector<32x32xf32>, vector<32x32xf32>, vector<32x32xf32> -> vector<32x32xf32>
    %c0_27 = arith.constant 0 : index
    %c0_28 = arith.constant 0 : index
    %27 = vector.load %arg8[%c0_27, %c0_28] : memref<1x32xf32, #tpu.memory_space<vmem>>, vector<1x32xf32>
    %28 = vector.broadcast %27 : vector<1x32xf32> to vector<32x32xf32>
    %29 = arith.addf %26, %28 : vector<32x32xf32>
    %30 = vector.shape_cast %29 : vector<32x32xf32> to vector<1x32x32xf32>
    %c0_29 = arith.constant 0 : index
    %c0_30 = arith.constant 0 : index
    %c0_31 = arith.constant 0 : index
    %31 = vector.load %arg10[%c0_29, %c0_30, %c0_31] : memref<1x32x32xf32, #tpu.memory_space<vmem>>, vector<1x32x32xf32>
    tpu.vector_store %arg10[%c0_29, %c0_30, %c0_31], %30 {strides = array<i32>} : memref<1x32x32xf32, #tpu.memory_space<vmem>>, vector<1x32x32xf32>,
    return
  }
  func.func @transform_0(%arg0: i32) -> (i32, i32, i32) {
    %c0_i32 = arith.constant 0 : i32
    %c0_i32_0 = arith.constant 0 : i32
    %c0_i32_1 = arith.constant 0 : i32
    return %arg0, %c0_i32, %c0_i32_0 : i32, i32, i32
  }
  func.func @transform_1(%arg0: i32) -> (i32, i32, i32) {
    %c0_i32 = arith.constant 0 : i32
    %c0_i32_0 = arith.constant 0 : i32
    %c0_i32_1 = arith.constant 0 : i32
    return %arg0, %c0_i32, %c0_i32_0 : i32, i32, i32
  }
  func.func @transform_2(%arg0: i32) -> (i32, i32) {
    %c0_i32 = arith.constant 0 : i32
    %c0_i32_0 = arith.constant 0 : i32
    %c0_i32_1 = arith.constant 0 : i32
    return %c0_i32, %c0_i32_0 : i32, i32
  }
  func.func @transform_3(%arg0: i32) -> (i32, i32) {
    %c0_i32 = arith.constant 0 : i32
    %c0_i32_0 = arith.constant 0 : i32
    %c0_i32_1 = arith.constant 0 : i32
    return %c0_i32, %c0_i32_0 : i32, i32
  }
  func.func @transform_4(%arg0: i32) -> (i32, i32) {
    %c0_i32 = arith.constant 0 : i32
    %c0_i32_0 = arith.constant 0 : i32
    %c0_i32_1 = arith.constant 0 : i32
    return %c0_i32, %c0_i32_0 : i32, i32
  }
  func.func @transform_5(%arg0: i32) -> (i32, i32) {
    %c0_i32 = arith.constant 0 : i32
    %c0_i32_0 = arith.constant 0 : i32
    %c0_i32_1 = arith.constant 0 : i32
    return %c0_i32, %c0_i32_0 : i32, i32
  }
  func.func @transform_6(%arg0: i32) -> (i32, i32) {
    %c0_i32 = arith.constant 0 : i32
    %c0_i32_0 = arith.constant 0 : i32
    %c0_i32_1 = arith.constant 0 : i32
    return %c0_i32, %c0_i32_0 : i32, i32
  }
  func.func @transform_7(%arg0: i32) -> (i32, i32) {
    %c0_i32 = arith.constant 0 : i32
    %c0_i32_0 = arith.constant 0 : i32
    %c0_i32_1 = arith.constant 0 : i32
    return %c0_i32, %c0_i32_0 : i32, i32
  }
  func.func @transform_8(%arg0: i32) -> (i32, i32, i32) {
    %c0_i32 = arith.constant 0 : i32
    %c0_i32_0 = arith.constant 0 : i32
    %c0_i32_1 = arith.constant 0 : i32
    return %arg0, %c0_i32, %c0_i32_0 : i32, i32, i32
  }
  func.func @transform_9(%arg0: i32) -> (i32, i32, i32) {
    %c0_i32 = arith.constant 0 : i32
    %c0_i32_0 = arith.constant 0 : i32
    %c0_i32_1 = arith.constant 0 : i32
    return %arg0, %c0_i32, %c0_i32_0 : i32, i32, i32
  }
}

</mosaic_0001>

<llo_original>
// kernel: tpu_custom_call.1
$region0: #{tpu_custom_call.1}
  #allocation0 [shape = 'u32[]', space=smem, size = 0x4, offset = 0x4, fixed_abs, tag = 'smem constant byte address 0x4 - core index']
  #allocation1 [shape = 'u32[144,128]{1,0:T(1,128)}', space=vmem, size = 0x12000, scoped, tag = 'internal scratch']
  %s0 = inlined_call_operand.vmem [shape: f32[2,32,16], index: 0, kind: input, shape index: {}]
  %s1 = inlined_call_operand.vmem [shape: f32[2,32,16], index: 1, kind: input, shape index: {}]
  %s2 = inlined_call_operand.vmem [shape: f32[16,32], index: 2, kind: input, shape index: {}]
  %s3 = inlined_call_operand.vmem [shape: f32[1,32], index: 3, kind: input, shape index: {}]
  %s4 = inlined_call_operand.vmem [shape: f32[32,32], index: 4, kind: input, shape index: {}]
  %s5 = inlined_call_operand.vmem [shape: f32[1,32], index: 5, kind: input, shape index: {}]
  %s6 = inlined_call_operand.vmem [shape: f32[32,32], index: 6, kind: input, shape index: {}]
  %s7 = inlined_call_operand.vmem [shape: f32[1,32], index: 7, kind: input, shape index: {}]
  %s8 = inlined_call_operand.hbm [shape: f32[2,32,32], index: 8, kind: output, shape index: {0}]
  %s9 = inlined_call_operand.hbm [shape: f32[2,32,32], index: 9, kind: output, shape index: {1}]
  %10 = xla_tuple %s8, %s9
  %s11 = sld [smem:[#allocation0]]
  $region73: #{tpu_custom_call.1} parent=0
    _
  %s13 = ssub.s32 1, %s11
  %s14 = scalar_select 0, %s13, %s11
  $region1: #{tpu_custom_call.1} parent=0
    #allocation2 [shape = 'u8[32768]{0}', space=vmem, size = 0x8000, scoped, tag = 'output window, operand 0']
    #allocation3 [shape = 's32[2]{0}', space=sflag, size = 0x8, scoped, tag = 'scoped memory for tpu_custom_call.1']
    #allocation4 [shape = 'u8[32768]{0}', space=vmem, size = 0x8000, scoped, tag = 'output window, operand 1']
    #allocation5 [shape = 's32[2]{0}', space=sflag, size = 0x8, scoped, tag = 'scoped memory for tpu_custom_call.1']
    %15 = vsyncpa [#allocation3], 0
    %s16 = scalar_lea.sflag [#allocation3], 1
    %17 = vsyncpa %s16, 0
    %18 = vsyncpa [#allocation5], 0
    %s19 = scalar_lea.sflag [#allocation5], 1
    %20 = vsyncpa %s19, 0
    loop: start=0, step=1, limit=4
    $region2: #{tpu_custom_call.1} parent=1 // loop_pre_header
      _
    $region3: #{tpu_custom_call.1} parent=1 // loop_header
      %s22 = sphi 0, %s26
      %p23 = scmp.ge.s32.totalorder %s22, 4
      %s32 = sphi 0, %s34
      %s35 = sphi 0, %s32
      %s36 = sphi 0, %s35
      %s52 = sphi 0, %s36
      %s58 = sphi 0, %s60
      %s61 = sphi 0, %s58
      %s62 = sphi 0, %s61
      %s78 = sphi 0, %s62
      %s82 = sphi 0, %s82
      %s84 = sphi 0, %s82
      %s85 = sphi 0, %s84
      %s99 = sphi 0, %s85
      %s103 = sphi 0, %s103
      %s105 = sphi 0, %s103
      %s106 = sphi 0, %s105
      %s120 = sphi 0, %s106
      %s124 = sphi 0, %s124
      %s126 = sphi 0, %s124
      %s127 = sphi 0, %s126
      %s141 = sphi 0, %s127
      %s145 = sphi 0, %s145
      %s147 = sphi 0, %s145
      %s148 = sphi 0, %s147
      %s162 = sphi 0, %s148
      %s166 = sphi 0, %s166
      %s168 = sphi 0, %s166
      %s169 = sphi 0, %s168
      %s183 = sphi 0, %s169
      %s187 = sphi 0, %s187
      %s189 = sphi 0, %s187
      %s190 = sphi 0, %s189
      %s204 = sphi 0, %s190
      %s210 = sphi 0, %s212
      %s213 = sphi 0, %s210
      %s214 = sphi 0, %s213
      %s230 = sphi 0, %s214
      %s236 = sphi 0, %s238
      %s239 = sphi 0, %s236
      %s240 = sphi 0, %s239
      %s256 = sphi 0, %s240
    $region4: #{tpu_custom_call.1} parent=1 // loop_header_branch
      %25 = sbr.rel (%p23) target = $region8
    $region5: #{tpu_custom_call.1} parent=1 // loop_body
      %s27 = ssub.s32 %s22, 1
      %s28 = ssub.s32 %s22, 2
      %s29 = sadd.s32 %s22, 1
      %s30 = ssub.s32 %s22, %s29
      %p31 = scmp.eq.s32.totalorder %s30, 0
      %s33 = sadd.s32 %s32, 1
      %s34 = scalar_select %p31, %s32, %s33
      %p37 = pneg %p31
      %p38 = scmp.eq.s32.totalorder %s22, 1
      %p39 = por %p37, %p38
      %p40 = scmp.ne.s32.totalorder %s32, %s35
      %p41 = scmp.eq.s32.totalorder %s22, 0
      %p42 = por %p40, %p41
      %p43 = scmp.ne.s32.totalorder %s32, %s35
      %p44 = scmp.eq.s32.totalorder %s27, 1
      %p45 = por %p43, %p44
      %p46 = scmp.ne.s32.totalorder %s35, %s36
      %p47 = scmp.eq.s32.totalorder %s27, 0
      %p48 = por %p46, %p47
      %p49 = scmp.ne.s32.totalorder %s35, %s36
      %p50 = scmp.eq.s32.totalorder %s28, 1
      %p51 = por %p49, %p50
      %p53 = scmp.ne.s32.totalorder %s36, %s52
      %p54 = scmp.eq.s32.totalorder %s28, 0
      %p55 = por %p53, %p54
      %s56 = ssub.s32 %s22, %s29
      %p57 = scmp.eq.s32.totalorder %s56, 0
      %s59 = sadd.s32 %s58, 1
      %s60 = scalar_select %p57, %s58, %s59
      %p63 = pneg %p57
      %p64 = scmp.eq.s32.totalorder %s22, 1
      %p65 = por %p63, %p64
      %p66 = scmp.ne.s32.totalorder %s58, %s61
      %p67 = scmp.eq.s32.totalorder %s22, 0
      %p68 = por %p66, %p67
      %p69 = scmp.ne.s32.totalorder %s58, %s61
      %p70 = scmp.eq.s32.totalorder %s27, 1
      %p71 = por %p69, %p70
      %p72 = scmp.ne.s32.totalorder %s61, %s62
      %p73 = scmp.eq.s32.totalorder %s27, 0
      %p74 = por %p72, %p73
      %p75 = scmp.ne.s32.totalorder %s61, %s62
      %p76 = scmp.eq.s32.totalorder %s28, 1
      %p77 = por %p75, %p76
      %p79 = scmp.ne.s32.totalorder %s62, %s78
      %p80 = scmp.eq.s32.totalorder %s28, 0
      %p81 = por %p79, %p80
      %s83 = sadd.s32 %s82, 1
      %p86 = scmp.eq.s32.totalorder %s22, 1
      %p87 = scmp.ne.s32.totalorder %s82, %s84
      %p88 = scmp.eq.s32.totalorder %s22, 0
      %p89 = por %p87, %p88
      %p90 = scmp.ne.s32.totalorder %s82, %s84
      %p91 = scmp.eq.s32.totalorder %s27, 1
      %p92 = por %p90, %p91
      %p93 = scmp.ne.s32.totalorder %s84, %s85
      %p94 = scmp.eq.s32.totalorder %s27, 0
      %p95 = por %p93, %p94
      %p96 = scmp.ne.s32.totalorder %s84, %s85
      %p97 = scmp.eq.s32.totalorder %s28, 1
      %p98 = por %p96, %p97
      %p100 = scmp.ne.s32.totalorder %s85, %s99
      %p101 = scmp.eq.s32.totalorder %s28, 0
      %p102 = por %p100, %p101
      %s104 = sadd.s32 %s103, 1
      %p107 = scmp.eq.s32.totalorder %s22, 1
      %p108 = scmp.ne.s32.totalorder %s103, %s105
      %p109 = scmp.eq.s32.totalorder %s22, 0
      %p110 = por %p108, %p109
      %p111 = scmp.ne.s32.totalorder %s103, %s105
      %p112 = scmp.eq.s32.totalorder %s27, 1
      %p113 = por %p111, %p112
      %p114 = scmp.ne.s32.totalorder %s105, %s106
      %p115 = scmp.eq.s32.totalorder %s27, 0
      %p116 = por %p114, %p115
      %p117 = scmp.ne.s32.totalorder %s105, %s106
      %p118 = scmp.eq.s32.totalorder %s28, 1
      %p119 = por %p117, %p118
      %p121 = scmp.ne.s32.totalorder %s106, %s120
      %p122 = scmp.eq.s32.totalorder %s28, 0
      %p123 = por %p121, %p122
      %s125 = sadd.s32 %s124, 1
      %p128 = scmp.eq.s32.totalorder %s22, 1
      %p129 = scmp.ne.s32.totalorder %s124, %s126
      %p130 = scmp.eq.s32.totalorder %s22, 0
      %p131 = por %p129, %p130
      %p132 = scmp.ne.s32.totalorder %s124, %s126
      %p133 = scmp.eq.s32.totalorder %s27, 1
      %p134 = por %p132, %p133
      %p135 = scmp.ne.s32.totalorder %s126, %s127
      %p136 = scmp.eq.s32.totalorder %s27, 0
      %p137 = por %p135, %p136
      %p138 = scmp.ne.s32.totalorder %s126, %s127
      %p139 = scmp.eq.s32.totalorder %s28, 1
      %p140 = por %p138, %p139
      %p142 = scmp.ne.s32.totalorder %s127, %s141
      %p143 = scmp.eq.s32.totalorder %s28, 0
      %p144 = por %p142, %p143
      %s146 = sadd.s32 %s145, 1
      %p149 = scmp.eq.s32.totalorder %s22, 1
      %p150 = scmp.ne.s32.totalorder %s145, %s147
      %p151 = scmp.eq.s32.totalorder %s22, 0
      %p152 = por %p150, %p151
      %p153 = scmp.ne.s32.totalorder %s145, %s147
      %p154 = scmp.eq.s32.totalorder %s27, 1
      %p155 = por %p153, %p154
      %p156 = scmp.ne.s32.totalorder %s147, %s148
      %p157 = scmp.eq.s32.totalorder %s27, 0
      %p158 = por %p156, %p157
      %p159 = scmp.ne.s32.totalorder %s147, %s148
      %p160 = scmp.eq.s32.totalorder %s28, 1
      %p161 = por %p159, %p160
      %p163 = scmp.ne.s32.totalorder %s148, %s162
      %p164 = scmp.eq.s32.totalorder %s28, 0
      %p165 = por %p163, %p164
      %s167 = sadd.s32 %s166, 1
      %p170 = scmp.eq.s32.totalorder %s22, 1
      %p171 = scmp.ne.s32.totalorder %s166, %s168
      %p172 = scmp.eq.s32.totalorder %s22, 0
      %p173 = por %p171, %p172
      %p174 = scmp.ne.s32.totalorder %s166, %s168
      %p175 = scmp.eq.s32.totalorder %s27, 1
      %p176 = por %p174, %p175
      %p177 = scmp.ne.s32.totalorder %s168, %s169
      %p178 = scmp.eq.s32.totalorder %s27, 0
      %p179 = por %p177, %p178
      %p180 = scmp.ne.s32.totalorder %s168, %s169
      %p181 = scmp.eq.s32.totalorder %s28, 1
      %p182 = por %p180, %p181
      %p184 = scmp.ne.s32.totalorder %s169, %s183
      %p185 = scmp.eq.s32.totalorder %s28, 0
      %p186 = por %p184, %p185
      %s188 = sadd.s32 %s187, 1
      %p191 = scmp.eq.s32.totalorder %s22, 1
      %p192 = scmp.ne.s32.totalorder %s187, %s189
      %p193 = scmp.eq.s32.totalorder %s22, 0
      %p194 = por %p192, %p193
      %p195 = scmp.ne.s32.totalorder %s187, %s189
      %p196 = scmp.eq.s32.totalorder %s27, 1
      %p197 = por %p195, %p196
      %p198 = scmp.ne.s32.totalorder %s189, %s190
      %p199 = scmp.eq.s32.totalorder %s27, 0
      %p200 = por %p198, %p199
      %p201 = scmp.ne.s32.totalorder %s189, %s190
      %p202 = scmp.eq.s32.totalorder %s28, 1
      %p203 = por %p201, %p202
      %p205 = scmp.ne.s32.totalorder %s190, %s204
      %p206 = scmp.eq.s32.totalorder %s28, 0
      %p207 = por %p205, %p206
      %s208 = ssub.s32 %s22, %s29
      %p209 = scmp.eq.s32.totalorder %s208, 0
      %s211 = sadd.s32 %s210, 1
      %s212 = scalar_select %p209, %s210, %s211
      %p215 = pneg %p209
      %p216 = scmp.eq.s32.totalorder %s22, 1
      %p217 = por %p215, %p216
      %p218 = scmp.ne.s32.totalorder %s210, %s213
      %p219 = scmp.eq.s32.totalorder %s22, 0
      %p220 = por %p218, %p219
      %p221 = scmp.ne.s32.totalorder %s210, %s213
      %p222 = scmp.eq.s32.totalorder %s27, 1
      %p223 = por %p221, %p222
      %p224 = scmp.ne.s32.totalorder %s213, %s214
      %p225 = scmp.eq.s32.totalorder %s27, 0
      %p226 = por %p224, %p225
      %p227 = scmp.ne.s32.totalorder %s213, %s214
      %p228 = scmp.eq.s32.totalorder %s28, 1
      %p229 = por %p227, %p228
      %p231 = scmp.ne.s32.totalorder %s214, %s230
      %p232 = scmp.eq.s32.totalorder %s28, 0
      %p233 = por %p231, %p232
      %s234 = ssub.s32 %s22, %s29
      %p235 = scmp.eq.s32.totalorder %s234, 0
      %s237 = sadd.s32 %s236, 1
      %s238 = scalar_select %p235, %s236, %s237
      %p241 = pneg %p235
      %p242 = scmp.eq.s32.totalorder %s22, 1
      %p243 = por %p241, %p242
      %p244 = scmp.ne.s32.totalorder %s236, %s239
      %p245 = scmp.eq.s32.totalorder %s22, 0
      %p246 = por %p244, %p245
      %p247 = scmp.ne.s32.totalorder %s236, %s239
      %p248 = scmp.eq.s32.totalorder %s27, 1
      %p249 = por %p247, %p248
      %p250 = scmp.ne.s32.totalorder %s239, %s240
      %p251 = scmp.eq.s32.totalorder %s27, 0
      %p252 = por %p250, %p251
      %p253 = scmp.ne.s32.totalorder %s239, %s240
      %p254 = scmp.eq.s32.totalorder %s28, 1
      %p255 = por %p253, %p254
      %p257 = scmp.ne.s32.totalorder %s240, %s256
      %p258 = scmp.eq.s32.totalorder %s28, 0
      %p259 = por %p257, %p258
      %p260 = scmp.le.s32.totalorder 1, %s22
      %p261 = scmp.lt.s32.totalorder %s22, 3
      %p262 = pnand %p260, %p261
      %p263 = pneg %p262
      // Predicated region
      $region9: #{tpu_custom_call.1} parent=5 // pred_check
        _
      $region10: #{tpu_custom_call.1} parent=5 // pred_check_branch
        %265 = sbr.rel (%p262) target = $region12
      $region11: #{tpu_custom_call.1} parent=5 // pred_region
        %s266 = ssub.s32 %s22, 1
        // Predicated region
        $region13: #{tpu_custom_call.1} parent=11 // pred_check
          %p267 = pneg %p95
        $region14: #{tpu_custom_call.1} parent=11 // pred_check_branch
          %269 = sbr.rel (%p267) target = $region16
        $region15: #{tpu_custom_call.1} parent=11 // pred_region
          _
        $region16: #{tpu_custom_call.1} parent=11 // pred_fallthru
          _
        // Predicated region
        $region17: #{tpu_custom_call.1} parent=11 // pred_check
          %p270 = pneg %p116
        $region18: #{tpu_custom_call.1} parent=11 // pred_check_branch
          %272 = sbr.rel (%p270) target = $region20
        $region19: #{tpu_custom_call.1} parent=11 // pred_region
          _
        $region20: #{tpu_custom_call.1} parent=11 // pred_fallthru
          _
        // Predicated region
        $region21: #{tpu_custom_call.1} parent=11 // pred_check
          %p273 = pneg %p137
        $region22: #{tpu_custom_call.1} parent=11 // pred_check_branch
          %275 = sbr.rel (%p273) target = $region24
        $region23: #{tpu_custom_call.1} parent=11 // pred_region
          _
        $region24: #{tpu_custom_call.1} parent=11 // pred_fallthru
          _
        // Predicated region
        $region25: #{tpu_custom_call.1} parent=11 // pred_check
          %p276 = pneg %p158
        $region26: #{tpu_custom_call.1} parent=11 // pred_check_branch
          %278 = sbr.rel (%p276) target = $region28
        $region27: #{tpu_custom_call.1} parent=11 // pred_region
          _
        $region28: #{tpu_custom_call.1} parent=11 // pred_fallthru
          _
        // Predicated region
        $region29: #{tpu_custom_call.1} parent=11 // pred_check
          %p279 = pneg %p179
        $region30: #{tpu_custom_call.1} parent=11 // pred_check_branch
          %281 = sbr.rel (%p279) target = $region32
        $region31: #{tpu_custom_call.1} parent=11 // pred_region
          _
        $region32: #{tpu_custom_call.1} parent=11 // pred_fallthru
          _
        // Predicated region
        $region33: #{tpu_custom_call.1} parent=11 // pred_check
          %p282 = pneg %p200
        $region34: #{tpu_custom_call.1} parent=11 // pred_check_branch
          %284 = sbr.rel (%p282) target = $region36
        $region35: #{tpu_custom_call.1} parent=11 // pred_region
          _
        $region36: #{tpu_custom_call.1} parent=11 // pred_fallthru
          _
      $region12: #{tpu_custom_call.1} parent=5 // pred_fallthru
        _
      %p285 = scmp.lt.s32.totalorder %s22, 2
      // Predicated region
      $region37: #{tpu_custom_call.1} parent=5 // pred_check
        %p286 = pneg %p285
      $region38: #{tpu_custom_call.1} parent=5 // pred_check_branch
        %288 = sbr.rel (%p286) target = $region40
      $region39: #{tpu_custom_call.1} parent=5 // pred_region
        // Predicated region
        $region41: #{tpu_custom_call.1} parent=39 // pred_check
          %p289 = pneg %p42
        $region42: #{tpu_custom_call.1} parent=39 // pred_check_branch
          %291 = sbr.rel (%p289) target = $region44
        $region43: #{tpu_custom_call.1} parent=39 // pred_region
          %p292 = scmp.lt.s32.totalorder %s22, 1
          %s293 = scalar_select %p292, %s22, 1
          %s294 = smul.addr %s293, 4
          %s295 = smul.addr %s294, 8
          %s296 = scalar_lea.vmem %s0, %s295
        $region44: #{tpu_custom_call.1} parent=39 // pred_fallthru
          _
        // Predicated region
        $region45: #{tpu_custom_call.1} parent=39 // pred_check
          %p297 = pneg %p68
        $region46: #{tpu_custom_call.1} parent=39 // pred_check_branch
          %299 = sbr.rel (%p297) target = $region48
        $region47: #{tpu_custom_call.1} parent=39 // pred_region
          %p300 = scmp.lt.s32.totalorder %s22, 1
          %s301 = scalar_select %p300, %s22, 1
          %s302 = smul.addr %s301, 4
          %s303 = smul.addr %s302, 8
          %s304 = scalar_lea.vmem %s1, %s303
        $region48: #{tpu_custom_call.1} parent=39 // pred_fallthru
          _
      $region40: #{tpu_custom_call.1} parent=5 // pred_fallthru
        _
      %p305 = scmp.le.s32.totalorder 1, %s22
      %p306 = scmp.lt.s32.totalorder %s22, 3
      %p307 = pnand %p305, %p306
      %p308 = pneg %p307
      // Predicated region
      $region49: #{tpu_custom_call.1} parent=5 // pred_check
        _
      $region50: #{tpu_custom_call.1} parent=5 // pred_check_branch
        %310 = sbr.rel (%p307) target = $region52
      $region51: #{tpu_custom_call.1} parent=5 // pred_region
        %s311 = ssub.s32 %s22, 1
        %p312 = scmp.lt.s32.totalorder %s27, 1
        %s313 = scalar_select %p312, %s27, 1
        %s314 = smul.addr %s313, 4
        %s315 = smul.addr %s314, 8
        %s316 = scalar_lea.vmem %s0, %s315
        %p317 = pneg %p48
        %p318 = pneg %p45
        %p319 = scmp.lt.s32.totalorder %s27, 1
        %s320 = scalar_select %p319, %s27, 1
        %s321 = smul.addr %s320, 4
        %s322 = smul.addr %s321, 8
        %s323 = scalar_lea.vmem %s1, %s322
        %p324 = pneg %p74
        %p325 = pneg %p71
        %p326 = pneg %p95
        %p327 = pneg %p92
        %p328 = pneg %p116
        %p329 = pneg %p113
        %p330 = pneg %p137
        %p331 = pneg %p134
        %p332 = pneg %p158
        %p333 = pneg %p155
        %p334 = pneg %p179
        %p335 = pneg %p176
        %p336 = pneg %p200
        %p337 = pneg %p197
        %p338 = pneg %p226
        %p339 = pneg %p223
        %s340 = sand.u32 %s213, 1
        %s341 = scalar_lea.sflag [#allocation3], %s340
        %s342 = sand.u32 %s213, 1
        %s343 = smul.addr %s342, 32
        %s344 = scalar_lea.vmem [#allocation2], %s343
        %p345 = pneg %p252
        %p346 = pneg %p249
        %s347 = sand.u32 %s239, 1
        %s348 = scalar_lea.sflag [#allocation5], %s347
        %s349 = sand.u32 %s239, 1
        %s350 = smul.addr %s349, 32
        %s351 = scalar_lea.vmem [#allocation4], %s350
        %p352 = scmp.lt.s32.totalorder %s27, 1
        %s353 = scalar_select %p352, %s27, 1
        %s354 = smul.addr %s353, 4
        %s355 = smul.addr %s354, 8
        %s356 = scalar_lea.vmem %s0, %s355
        %p357 = scmp.lt.s32.totalorder %s27, 1
        %s358 = scalar_select %p357, %s27, 1
        %s359 = smul.addr %s358, 4
        %s360 = smul.addr %s359, 8
        %s361 = scalar_lea.vmem %s1, %s360
        %v362 = vld [vmem:[%s356] sm:$0xff]
        %v363 = vld [vmem:[%s356 + $0x8] sm:$0xff]
        %v364 = vld [vmem:[%s356 + $0x10] sm:$0xff]
        %v365 = vld [vmem:[%s356 + $0x18] sm:$0xff]
        %v366 = vld [vmem:[%s361] sm:$0xff]
        %v367 = vld [vmem:[%s361 + $0x8] sm:$0xff]
        %v368 = vld [vmem:[%s361 + $0x10] sm:$0xff]
        %v369 = vld [vmem:[%s361 + $0x18] sm:$0xff]
        %v370 = vld [vmem:[%s2] sm:$0xff]
        %v371 = vld [vmem:[%s2 + $0x8] sm:$0xff]
        %v372 = vld [vmem:[%s3] sm:$0x1]
        %v374 = vlaneseq
        %v375 = vshrl.u32 %v374, 7
        %v376 = vsub.s32 0, %v375
        %v377 = vrot.slane %v372, %v376
        %vm379 = vcmask 130048
        %v381 = vsel %vm379, %v362, 0
        %v384 = vsel %vm379, %v363, 0
        %v387 = vsel %vm379, %v364, 0
        %v390 = vsel %vm379, %v365, 0
        %392 = vmatprep.subr.mxu0 0.0
        %393 = vmatpush1.msra.mxu0 %v370
        %394 = vmatprep.subr.mxu0 0.0
        %395 = vmatpush1.msra.mxu0 %v371
        %396 = vmatprep.subr.mxu0 0.0
        %397 = vmatpush1.msra.mxu0 0.0
        %398 = vmatprep.subr.mxu0 0.0
        %399 = vmatpush1.msra.mxu0 0.0
        %400 = vmatprep.subr.mxu0 0.0
        %401 = vmatpush1.msra.mxu0 0.0
        %402 = vmatprep.subr.mxu0 0.0
        %403 = vmatpush1.msra.mxu0 0.0
        %404 = vmatprep.subr.mxu0 0.0
        %405 = vmatpush1.msra.mxu0 0.0
        %406 = vmatprep.subr.mxu0 0.0
        %407 = vmatpush1.msra.mxu0 0.0
        %408 = vmatprep.subr.mxu0 0.0
        %409 = vmatpush1.msra.mxu0 0.0
        %410 = vmatprep.subr.mxu0 0.0
        %411 = vmatpush1.msra.mxu0 0.0
        %412 = vmatprep.subr.mxu0 0.0
        %413 = vmatpush1.msra.mxu0 0.0
        %414 = vmatprep.subr.mxu0 0.0
        %415 = vmatpush1.msra.mxu0 0.0
        %416 = vmatprep.subr.mxu0 0.0
        %417 = vmatpush1.msra.mxu0 0.0
        %418 = vmatprep.subr.mxu0 0.0
        %419 = vmatpush1.msra.mxu0 0.0
        %420 = vmatprep.subr.mxu0 0.0
        %421 = vmatpush1.msra.mxu0 0.0
        %422 = vmatprep.subr.mxu0 0.0
        %423 = vmatpush1.msra.mxu0 0.0
        %424 = vmatprep.subr.mxu0 0.0
        %425 = vmatpush1.msra.mxu0 0.0
        %426 = vmatprep.subr.mxu0 0.0
        %427 = vmatpush1.msra.mxu0 0.0
        %428 = vmatprep.subr.mxu0 0.0
        %429 = vmatpush1.msra.mxu0 0.0
        %430 = vmatprep.subr.mxu0 0.0
        %431 = vmatpush1.msra.mxu0 0.0
        %432 = vmatprep.subr.mxu0 0.0
        %433 = vmatpush1.msra.mxu0 0.0
        %434 = vmatprep.subr.mxu0 0.0
        %435 = vmatpush1.msra.mxu0 0.0
        %436 = vmatprep.subr.mxu0 0.0
        %437 = vmatpush1.msra.mxu0 0.0
        %438 = vmatprep.subr.mxu0 0.0
        %439 = vmatpush1.msra.mxu0 0.0
        %440 = vmatprep.subr.mxu0 0.0
        %441 = vmatpush1.msra.mxu0 0.0
        %442 = vmatprep.subr.mxu0 0.0
        %443 = vmatpush1.msra.mxu0 0.0
        %444 = vmatprep.subr.mxu0 0.0
        %445 = vmatpush1.msra.mxu0 0.0
        %446 = vmatprep.subr.mxu0 0.0
        %447 = vmatpush1.msra.mxu0 0.0
        %448 = vmatprep.subr.mxu0 0.0
        %449 = vmatpush1.msra.mxu0 0.0
        %450 = vmatprep.subr.mxu0 0.0
        %451 = vmatpush1.msra.mxu0 0.0
        %452 = vmatprep.subr.mxu0 0.0
        %453 = vmatpush1.msra.mxu0 0.0
        %454 = vmatprep.subr.mxu0 0.0
        %455 = vmatpush1.msra.mxu0 0.0
        %456 = vmatprep.mubr.f32.mxu0 0.0
        %457 = vmatmul.mubr.f32.gmra.mrb[0].mxu0 %v381
        %v458 = vpop.f32.mrb[0].mxu0
        %v459 = vadd.f32 %v377, %v458
        %v460 = vpop.f32.mrb[0].mxu0
        %461 = vmatprep.mubr.f32.mxu0 0.0
        %462 = vmatmul.mubr.f32.gmra.mrb[0].mxu0 %v384
        %v463 = vpop.f32.mrb[0].mxu0
        %v464 = vadd.f32 %v377, %v463
        %v465 = vpop.f32.mrb[0].mxu0
        %466 = vmatprep.mubr.f32.mxu0 0.0
        %467 = vmatmul.mubr.f32.gmra.mrb[0].mxu0 %v387
        %v468 = vpop.f32.mrb[0].mxu0
        %v469 = vadd.f32 %v377, %v468
        %v470 = vpop.f32.mrb[0].mxu0
        %471 = vmatprep.mubr.f32.mxu0 0.0
        %472 = vmatmul.mubr.f32.gmra.mrb[0].mxu0 %v390
        %v473 = vpop.f32.mrb[0].mxu0
        %v474 = vadd.f32 %v377, %v473
        %v475 = vpop.f32.mrb[0].mxu0
        %476 = vdwg.mxu0
        %v477 = vmax.f32 %v459, 0.0
        %v478 = vmax.f32 %v464, 0.0
        %v479 = vmax.f32 %v469, 0.0
        %v480 = vmax.f32 %v474, 0.0
        %v482 = vsel %vm379, %v366, 0
        %v485 = vsel %vm379, %v367, 0
        %v488 = vsel %vm379, %v368, 0
        %v491 = vsel %vm379, %v369, 0
        %493 = vmatprep.subr.mxu0 0.0
        %494 = vmatpush1.msra.mxu0 %v370
        %495 = vmatprep.subr.mxu0 0.0
        %496 = vmatpush1.msra.mxu0 %v371
        %497 = vmatprep.subr.mxu0 0.0
        %498 = vmatpush1.msra.mxu0 0.0
        %499 = vmatprep.subr.mxu0 0.0
        %500 = vmatpush1.msra.mxu0 0.0
        %501 = vmatprep.subr.mxu0 0.0
        %502 = vmatpush1.msra.mxu0 0.0
        %503 = vmatprep.subr.mxu0 0.0
        %504 = vmatpush1.msra.mxu0 0.0
        %505 = vmatprep.subr.mxu0 0.0
        %506 = vmatpush1.msra.mxu0 0.0
        %507 = vmatprep.subr.mxu0 0.0
        %508 = vmatpush1.msra.mxu0 0.0
        %509 = vmatprep.subr.mxu0 0.0
        %510 = vmatpush1.msra.mxu0 0.0
        %511 = vmatprep.subr.mxu0 0.0
        %512 = vmatpush1.msra.mxu0 0.0
        %513 = vmatprep.subr.mxu0 0.0
        %514 = vmatpush1.msra.mxu0 0.0
        %515 = vmatprep.subr.mxu0 0.0
        %516 = vmatpush1.msra.mxu0 0.0
        %517 = vmatprep.subr.mxu0 0.0
        %518 = vmatpush1.msra.mxu0 0.0
        %519 = vmatprep.subr.mxu0 0.0
        %520 = vmatpush1.msra.mxu0 0.0
        %521 = vmatprep.subr.mxu0 0.0
        %522 = vmatpush1.msra.mxu0 0.0
        %523 = vmatprep.subr.mxu0 0.0
        %524 = vmatpush1.msra.mxu0 0.0
        %525 = vmatprep.subr.mxu0 0.0
        %526 = vmatpush1.msra.mxu0 0.0
        %527 = vmatprep.subr.mxu0 0.0
        %528 = vmatpush1.msra.mxu0 0.0
        %529 = vmatprep.subr.mxu0 0.0
        %530 = vmatpush1.msra.mxu0 0.0
        %531 = vmatprep.subr.mxu0 0.0
        %532 = vmatpush1.msra.mxu0 0.0
        %533 = vmatprep.subr.mxu0 0.0
        %534 = vmatpush1.msra.mxu0 0.0
        %535 = vmatprep.subr.mxu0 0.0
        %536 = vmatpush1.msra.mxu0 0.0
        %537 = vmatprep.subr.mxu0 0.0
        %538 = vmatpush1.msra.mxu0 0.0
        %539 = vmatprep.subr.mxu0 0.0
        %540 = vmatpush1.msra.mxu0 0.0
        %541 = vmatprep.subr.mxu0 0.0
        %542 = vmatpush1.msra.mxu0 0.0
        %543 = vmatprep.subr.mxu0 0.0
        %544 = vmatpush1.msra.mxu0 0.0
        %545 = vmatprep.subr.mxu0 0.0
        %546 = vmatpush1.msra.mxu0 0.0
        %547 = vmatprep.subr.mxu0 0.0
        %548 = vmatpush1.msra.mxu0 0.0
        %549 = vmatprep.subr.mxu0 0.0
        %550 = vmatpush1.msra.mxu0 0.0
        %551 = vmatprep.subr.mxu0 0.0
        %552 = vmatpush1.msra.mxu0 0.0
        %553 = vmatprep.subr.mxu0 0.0
        %554 = vmatpush1.msra.mxu0 0.0
        %555 = vmatprep.subr.mxu0 0.0
        %556 = vmatpush1.msra.mxu0 0.0
        %557 = vmatprep.mubr.f32.mxu0 0.0
        %558 = vmatmul.mubr.f32.gmra.mrb[0].mxu0 %v482
        %v559 = vpop.f32.mrb[0].mxu0
        %v560 = vadd.f32 %v377, %v559
        %v561 = vpop.f32.mrb[0].mxu0
        %562 = vmatprep.mubr.f32.mxu0 0.0
        %563 = vmatmul.mubr.f32.gmra.mrb[0].mxu0 %v485
        %v564 = vpop.f32.mrb[0].mxu0
        %v565 = vadd.f32 %v377, %v564
        %v566 = vpop.f32.mrb[0].mxu0
        %567 = vmatprep.mubr.f32.mxu0 0.0
        %568 = vmatmul.mubr.f32.gmra.mrb[0].mxu0 %v488
        %v569 = vpop.f32.mrb[0].mxu0
        %v570 = vadd.f32 %v377, %v569
        %v571 = vpop.f32.mrb[0].mxu0
        %572 = vmatprep.mubr.f32.mxu0 0.0
        %573 = vmatmul.mubr.f32.gmra.mrb[0].mxu0 %v491
        %v574 = vpop.f32.mrb[0].mxu0
        %v575 = vadd.f32 %v377, %v574
        %v576 = vpop.f32.mrb[0].mxu0
        %577 = vdwg.mxu0
        %v578 = vmax.f32 %v560, 0.0
        %v579 = vmax.f32 %v565, 0.0
        %v580 = vmax.f32 %v570, 0.0
        %v581 = vmax.f32 %v575, 0.0
        %v582 = vld [vmem:[%s4] sm:$0xff]
        %v583 = vld [vmem:[%s4 + $0x8] sm:$0xff]
        %v584 = vld [vmem:[%s4 + $0x10] sm:$0xff]
        %v585 = vld [vmem:[%s4 + $0x18] sm:$0xff]
        %v586 = vld [vmem:[%s5] sm:$0x1]
        %v588 = vlaneseq
        %v589 = vshrl.u32 %v588, 7
        %v590 = vsub.s32 0, %v589
        %v591 = vrot.slane %v586, %v590
        %vm593 = vcmask 261120
        %v595 = vsel %vm593, %v477, 0
        %v598 = vsel %vm593, %v478, 0
        %v601 = vsel %vm593, %v479, 0
        %v604 = vsel %vm593, %v480, 0
        %606 = vmatprep.subr.mxu0 0.0
        %607 = vmatpush1.msra.mxu0 %v582
        %608 = vmatprep.subr.mxu0 0.0
        %609 = vmatpush1.msra.mxu0 %v583
        %610 = vmatprep.subr.mxu0 0.0
        %611 = vmatpush1.msra.mxu0 %v584
        %612 = vmatprep.subr.mxu0 0.0
        %613 = vmatpush1.msra.mxu0 %v585
        %614 = vmatprep.subr.mxu0 0.0
        %615 = vmatpush1.msra.mxu0 0.0
        %616 = vmatprep.subr.mxu0 0.0
        %617 = vmatpush1.msra.mxu0 0.0
        %618 = vmatprep.subr.mxu0 0.0
        %619 = vmatpush1.msra.mxu0 0.0
        %620 = vmatprep.subr.mxu0 0.0
        %621 = vmatpush1.msra.mxu0 0.0
        %622 = vmatprep.subr.mxu0 0.0
        %623 = vmatpush1.msra.mxu0 0.0
        %624 = vmatprep.subr.mxu0 0.0
        %625 = vmatpush1.msra.mxu0 0.0
        %626 = vmatprep.subr.mxu0 0.0
        %627 = vmatpush1.msra.mxu0 0.0
        %628 = vmatprep.subr.mxu0 0.0
        %629 = vmatpush1.msra.mxu0 0.0
        %630 = vmatprep.subr.mxu0 0.0
        %631 = vmatpush1.msra.mxu0 0.0
        %632 = vmatprep.subr.mxu0 0.0
        %633 = vmatpush1.msra.mxu0 0.0
        %634 = vmatprep.subr.mxu0 0.0
        %635 = vmatpush1.msra.mxu0 0.0
        %636 = vmatprep.subr.mxu0 0.0
        %637 = vmatpush1.msra.mxu0 0.0
        %638 = vmatprep.subr.mxu0 0.0
        %639 = vmatpush1.msra.mxu0 0.0
        %640 = vmatprep.subr.mxu0 0.0
        %641 = vmatpush1.msra.mxu0 0.0
        %642 = vmatprep.subr.mxu0 0.0
        %643 = vmatpush1.msra.mxu0 0.0
        %644 = vmatprep.subr.mxu0 0.0
        %645 = vmatpush1.msra.mxu0 0.0
        %646 = vmatprep.subr.mxu0 0.0
        %647 = vmatpush1.msra.mxu0 0.0
        %648 = vmatprep.subr.mxu0 0.0
        %649 = vmatpush1.msra.mxu0 0.0
        %650 = vmatprep.subr.mxu0 0.0
        %651 = vmatpush1.msra.mxu0 0.0
        %652 = vmatprep.subr.mxu0 0.0
        %653 = vmatpush1.msra.mxu0 0.0
        %654 = vmatprep.subr.mxu0 0.0
        %655 = vmatpush1.msra.mxu0 0.0
        %656 = vmatprep.subr.mxu0 0.0
        %657 = vmatpush1.msra.mxu0 0.0
        %658 = vmatprep.subr.mxu0 0.0
        %659 = vmatpush1.msra.mxu0 0.0
        %660 = vmatprep.subr.mxu0 0.0
        %661 = vmatpush1.msra.mxu0 0.0
        %662 = vmatprep.subr.mxu0 0.0
        %663 = vmatpush1.msra.mxu0 0.0
        %664 = vmatprep.subr.mxu0 0.0
        %665 = vmatpush1.msra.mxu0 0.0
        %666 = vmatprep.subr.mxu0 0.0
        %667 = vmatpush1.msra.mxu0 0.0
        %668 = vmatprep.subr.mxu0 0.0
        %669 = vmatpush1.msra.mxu0 0.0
        %670 = vmatprep.mubr.f32.mxu0 0.0
        %671 = vmatmul.mubr.f32.gmra.mrb[0].mxu0 %v595
        %v672 = vpop.f32.mrb[0].mxu0
        %v673 = vadd.f32 %v591, %v672
        %v674 = vpop.f32.mrb[0].mxu0
        %675 = vmatprep.mubr.f32.mxu0 0.0
        %676 = vmatmul.mubr.f32.gmra.mrb[0].mxu0 %v598
        %v677 = vpop.f32.mrb[0].mxu0
        %v678 = vadd.f32 %v591, %v677
        %v679 = vpop.f32.mrb[0].mxu0
        %680 = vmatprep.mubr.f32.mxu0 0.0
        %681 = vmatmul.mubr.f32.gmra.mrb[0].mxu0 %v601
        %v682 = vpop.f32.mrb[0].mxu0
        %v683 = vadd.f32 %v591, %v682
        %v684 = vpop.f32.mrb[0].mxu0
        %685 = vmatprep.mubr.f32.mxu0 0.0
        %686 = vmatmul.mubr.f32.gmra.mrb[0].mxu0 %v604
        %v687 = vpop.f32.mrb[0].mxu0
        %v688 = vadd.f32 %v591, %v687
        %v689 = vpop.f32.mrb[0].mxu0
        %690 = vdwg.mxu0
        %691 = vst.msk [vmem:[%s344] sm:$0xff] %vm593, %v673
        %692 = vst.msk [vmem:[%s344 + $0x8] sm:$0xff] %vm593, %v678
        %693 = vst.msk [vmem:[%s344 + $0x10] sm:$0xff] %vm593, %v683
        %694 = vst.msk [vmem:[%s344 + $0x18] sm:$0xff] %vm593, %v688
        %v695 = vld [vmem:[%s6] sm:$0xff]
        %v696 = vld [vmem:[%s6 + $0x8] sm:$0xff]
        %v697 = vld [vmem:[%s6 + $0x10] sm:$0xff]
        %v698 = vld [vmem:[%s6 + $0x18] sm:$0xff]
        %v699 = vld [vmem:[%s7] sm:$0x1]
        %v701 = vlaneseq
        %v702 = vshrl.u32 %v701, 7
        %v703 = vsub.s32 0, %v702
        %v704 = vrot.slane %v699, %v703
        %v707 = vsel %vm593, %v578, 0
        %v710 = vsel %vm593, %v579, 0
        %v713 = vsel %vm593, %v580, 0
        %v716 = vsel %vm593, %v581, 0
        %718 = vmatprep.subr.mxu0 0.0
        %719 = vmatpush1.msra.mxu0 %v695
        %720 = vmatprep.subr.mxu0 0.0
        %721 = vmatpush1.msra.mxu0 %v696
        %722 = vmatprep.subr.mxu0 0.0
        %723 = vmatpush1.msra.mxu0 %v697
        %724 = vmatprep.subr.mxu0 0.0
        %725 = vmatpush1.msra.mxu0 %v698
        %726 = vmatprep.subr.mxu0 0.0
        %727 = vmatpush1.msra.mxu0 0.0
        %728 = vmatprep.subr.mxu0 0.0
        %729 = vmatpush1.msra.mxu0 0.0
        %730 = vmatprep.subr.mxu0 0.0
        %731 = vmatpush1.msra.mxu0 0.0
        %732 = vmatprep.subr.mxu0 0.0
        %733 = vmatpush1.msra.mxu0 0.0
        %734 = vmatprep.subr.mxu0 0.0
        %735 = vmatpush1.msra.mxu0 0.0
        %736 = vmatprep.subr.mxu0 0.0
        %737 = vmatpush1.msra.mxu0 0.0
        %738 = vmatprep.subr.mxu0 0.0
        %739 = vmatpush1.msra.mxu0 0.0
        %740 = vmatprep.subr.mxu0 0.0
        %741 = vmatpush1.msra.mxu0 0.0
        %742 = vmatprep.subr.mxu0 0.0
        %743 = vmatpush1.msra.mxu0 0.0
        %744 = vmatprep.subr.mxu0 0.0
        %745 = vmatpush1.msra.mxu0 0.0
        %746 = vmatprep.subr.mxu0 0.0
        %747 = vmatpush1.msra.mxu0 0.0
        %748 = vmatprep.subr.mxu0 0.0
        %749 = vmatpush1.msra.mxu0 0.0
        %750 = vmatprep.subr.mxu0 0.0
        %751 = vmatpush1.msra.mxu0 0.0
        %752 = vmatprep.subr.mxu0 0.0
        %753 = vmatpush1.msra.mxu0 0.0
        %754 = vmatprep.subr.mxu0 0.0
        %755 = vmatpush1.msra.mxu0 0.0
        %756 = vmatprep.subr.mxu0 0.0
        %757 = vmatpush1.msra.mxu0 0.0
        %758 = vmatprep.subr.mxu0 0.0
        %759 = vmatpush1.msra.mxu0 0.0
        %760 = vmatprep.subr.mxu0 0.0
        %761 = vmatpush1.msra.mxu0 0.0
        %762 = vmatprep.subr.mxu0 0.0
        %763 = vmatpush1.msra.mxu0 0.0
        %764 = vmatprep.subr.mxu0 0.0
        %765 = vmatpush1.msra.mxu0 0.0
        %766 = vmatprep.subr.mxu0 0.0
        %767 = vmatpush1.msra.mxu0 0.0
        %768 = vmatprep.subr.mxu0 0.0
        %769 = vmatpush1.msra.mxu0 0.0
        %770 = vmatprep.subr.mxu0 0.0
        %771 = vmatpush1.msra.mxu0 0.0
        %772 = vmatprep.subr.mxu0 0.0
        %773 = vmatpush1.msra.mxu0 0.0
        %774 = vmatprep.subr.mxu0 0.0
        %775 = vmatpush1.msra.mxu0 0.0
        %776 = vmatprep.subr.mxu0 0.0
        %777 = vmatpush1.msra.mxu0 0.0
        %778 = vmatprep.subr.mxu0 0.0
        %779 = vmatpush1.msra.mxu0 0.0
        %780 = vmatprep.subr.mxu0 0.0
        %781 = vmatpush1.msra.mxu0 0.0
        %782 = vmatprep.mubr.f32.mxu0 0.0
        %783 = vmatmul.mubr.f32.gmra.mrb[0].mxu0 %v707
        %v784 = vpop.f32.mrb[0].mxu0
        %v785 = vadd.f32 %v704, %v784
        %v786 = vpop.f32.mrb[0].mxu0
        %787 = vmatprep.mubr.f32.mxu0 0.0
        %788 = vmatmul.mubr.f32.gmra.mrb[0].mxu0 %v710
        %v789 = vpop.f32.mrb[0].mxu0
        %v790 = vadd.f32 %v704, %v789
        %v791 = vpop.f32.mrb[0].mxu0
        %792 = vmatprep.mubr.f32.mxu0 0.0
        %793 = vmatmul.mubr.f32.gmra.mrb[0].mxu0 %v713
        %v794 = vpop.f32.mrb[0].mxu0
        %v795 = vadd.f32 %v704, %v794
        %v796 = vpop.f32.mrb[0].mxu0
        %797 = vmatprep.mubr.f32.mxu0 0.0
        %798 = vmatmul.mubr.f32.gmra.mrb[0].mxu0 %v716
        %v799 = vpop.f32.mrb[0].mxu0
        %v800 = vadd.f32 %v704, %v799
        %v801 = vpop.f32.mrb[0].mxu0
        %802 = vdwg.mxu0
        %803 = vst.msk [vmem:[%s351] sm:$0xff] %vm593, %v785
        %804 = vst.msk [vmem:[%s351 + $0x8] sm:$0xff] %vm593, %v790
        %805 = vst.msk [vmem:[%s351 + $0x10] sm:$0xff] %vm593, %v795
        %806 = vst.msk [vmem:[%s351 + $0x18] sm:$0xff] %vm593, %v800
        %s807 = sand.u32 %s213, 1
        %s808 = scalar_lea.sflag [#allocation3], %s807
        %s809 = sand.u32 %s213, 1
        %s810 = smul.addr %s809, 32
        %s811 = scalar_lea.vmem [#allocation2], %s810
        %s812 = sand.u32 %s239, 1
        %s813 = scalar_lea.sflag [#allocation5], %s812
        %s814 = sand.u32 %s239, 1
        %s815 = smul.addr %s814, 32
        %s816 = scalar_lea.vmem [#allocation4], %s815
        // Predicated region
        $region53: #{tpu_custom_call.1} parent=51 // pred_check
          %p817 = pneg %p223
        $region54: #{tpu_custom_call.1} parent=51 // pred_check_branch
          %819 = sbr.rel (%p817) target = $region56
        $region55: #{tpu_custom_call.1} parent=51 // pred_region
          %s821 = ssub.s32 512, 512
          %822 = vsyncadd %s808, %s821
          %s823 = smul.addr %s27, 4
          %s824 = smul.addr %s823, 128
          %s825 = scalar_lea.hbm %s8, %s824
          %s826 = sshll.u32 %s811, 4
          %s827 = int_to_ptr.vmem [resolvable:$true] %s826
          %832 = dma.vmem_to_hbm [thread:$0]  %s827, 512, %s825, %s808, 128, 128, 8
        $region56: #{tpu_custom_call.1} parent=51 // pred_fallthru
          _
        // Predicated region
        $region57: #{tpu_custom_call.1} parent=51 // pred_check
          %p833 = pneg %p249
        $region58: #{tpu_custom_call.1} parent=51 // pred_check_branch
          %835 = sbr.rel (%p833) target = $region60
        $region59: #{tpu_custom_call.1} parent=51 // pred_region
          %s837 = ssub.s32 512, 512
          %838 = vsyncadd %s813, %s837
          %s839 = smul.addr %s27, 4
          %s840 = smul.addr %s839, 128
          %s841 = scalar_lea.hbm %s9, %s840
          %s842 = sshll.u32 %s816, 4
          %s843 = int_to_ptr.vmem [resolvable:$true] %s842
          %848 = dma.vmem_to_hbm [thread:$0]  %s843, 512, %s841, %s813, 128, 128, 8
        $region60: #{tpu_custom_call.1} parent=51 // pred_fallthru
          _
      $region52: #{tpu_custom_call.1} parent=5 // pred_fallthru
        _
      %p849 = scmp.le.s32.totalorder 2, %s22
      // Predicated region
      $region61: #{tpu_custom_call.1} parent=5 // pred_check
        %p850 = pneg %p849
      $region62: #{tpu_custom_call.1} parent=5 // pred_check_branch
        %852 = sbr.rel (%p850) target = $region64
      $region63: #{tpu_custom_call.1} parent=5 // pred_region
        %s853 = ssub.s32 %s22, 2
        // Predicated region
        $region65: #{tpu_custom_call.1} parent=63 // pred_check
          %p854 = pneg %p229
        $region66: #{tpu_custom_call.1} parent=63 // pred_check_branch
          %856 = sbr.rel (%p854) target = $region68
        $region67: #{tpu_custom_call.1} parent=63 // pred_region
          %s857 = sand.u32 %s214, 1
          %s858 = scalar_lea.sflag [#allocation3], %s857
          %s859 = sand.u32 %s214, 1
          %s860 = smul.addr %s859, 32
          %s861 = scalar_lea.vmem [#allocation2], %s860
          %862 = dma.done %s858, 512
        $region68: #{tpu_custom_call.1} parent=63 // pred_fallthru
          _
        // Predicated region
        $region69: #{tpu_custom_call.1} parent=63 // pred_check
          %p863 = pneg %p255
        $region70: #{tpu_custom_call.1} parent=63 // pred_check_branch
          %865 = sbr.rel (%p863) target = $region72
        $region71: #{tpu_custom_call.1} parent=63 // pred_region
          %s866 = sand.u32 %s240, 1
          %s867 = scalar_lea.sflag [#allocation5], %s866
          %s868 = sand.u32 %s240, 1
          %s869 = smul.addr %s868, 32
          %s870 = scalar_lea.vmem [#allocation4], %s869
          %871 = dma.done %s867, 512
        $region72: #{tpu_custom_call.1} parent=63 // pred_fallthru
          _
      $region64: #{tpu_custom_call.1} parent=5 // pred_fallthru
        _
    $region6: #{tpu_custom_call.1} parent=1 // loop_footer
      %s26 = sadd.s32 1, %s22
    $region7: #{tpu_custom_call.1} parent=1 // loop_footer_branch
      %21 = sbr.rel target = $region3
    $region8: #{tpu_custom_call.1} parent=1 // loop_exit
      _
    %872 = vsyncpa [#allocation3], 1
    %s873 = scalar_lea.sflag [#allocation3], 1
    %874 = vsyncpa %s873, 1
    %875 = vsyncpa [#allocation5], 1
    %s876 = scalar_lea.sflag [#allocation5], 1
    %877 = vsyncpa %s876, 1

</llo_original>
